<compile_context>
chip_gen: v7x
topology: tpu7x:2x2x1
jax: 0.10.0
libtpu: 0.0.40
codegen_flags: <defaults>
</compile_context>

<pallas_src>
import functools
import math

import jax
import jax.numpy as jnp
from jax.experimental import pallas as pl
from jax.experimental.pallas import tpu as pltpu


def _round_up(v, m):
    return (v + m - 1) // m * m


@functools.lru_cache(maxsize=None)
def _hw_config():
    """Returns (vmem_limit_bytes, default_block_b, default_block_k, b_splits)."""
    vmem_cap = None
    try:
        info = pltpu.get_tpu_info()
        vmem_cap = getattr(info, "vmem_capacity_bytes", None)
    except Exception:
        vmem_cap = None
    if vmem_cap is not None and vmem_cap >= 100 * 1024 * 1024:
        # v5e / v6e: 128 MiB physical VMEM, single TensorCore per chip.
        return 96 * 1024 * 1024, 512, 8192, 1
    # v7x (64 MiB physical VMEM, 2 TensorCores) or unknown hardware:
    # conservative VMEM budget, and split B so the "parallel" grid axis has
    # >= 2 blocks for megacore sharding.
    return 40 * 1024 * 1024, 256, 6272, 2


def _pick_tk(K, block_k):
    """K tile: full K if it fits, else the largest multiple of 128 that divides
    K (no ragged block); fall back to block_k (ragged last block) otherwise."""
    if K <= block_k:
        return K
    best = None
    t = 128
    while t <= block_k:
        if K % t == 0:
            best = t
        t += 128
    return best if best is not None else block_k


def _train_head_kernel(x_ref, w_ref, b_ref, o_ref, *, k_rem):
    # x_ref: [tb, tk]   activation tile (ideally already bf16 from producer)
    # w_ref: [tk, Np]   weight tile (compute dtype, zero-padded in K and N)
    # b_ref: [1, Np]    bias (f32, zero-padded in N)
    # o_ref: [tb, Np]   f32 output tile, resident across the k axis
    #                   (used directly as the accumulator; no scratch)
    k = pl.program_id(1)
    k_last = pl.num_programs(1) - 1

    @pl.when(k == 0)
    def _():
        o_ref[...] = jnp.zeros_like(o_ref)

    def _accum(x_blk):
        o_ref[...] += jnp.dot(
            x_blk.astype(w_ref.dtype), w_ref[...],
            preferred_element_type=jnp.float32,
        )

    if k_rem == 0:
        # Clean path: tk divides K (or equals K) - no masking anywhere.
        _accum(x_ref[...])
    else:
        # Ragged K: mask only the FINAL block (stale VMEM columns * zero-padded
        # weight rows could otherwise inject NaN/Inf); every other block takes
        # the cheap path.
        @pl.when(k != k_last)
        def _():
            _accum(x_ref[...])

        @pl.when(k == k_last)
        def _():
            col = jax.lax.broadcasted_iota(jnp.int32, x_ref.shape, 1)
            _accum(jnp.where(col < k_rem, x_ref[...], 0))

    @pl.when(k == k_last)
    def _():
        o_ref[...] += b_ref[...]


@functools.partial(jax.jit, static_argnames=("compute_dtype", "block_b", "block_k"))
def train_head_forward(x_nhwc, weight, bias, *, compute_dtype=jnp.bfloat16,
                       block_b=None, block_k=None):
    """Forward pass matching TrainHead.forward.

    x_nhwc : [B, H, W, C]      Producer contract: pass this already in bf16 so
                               the dominant HBM read is halved and the in-kernel
                               cast to the MXU dtype is a no-op.
    weight : [num_classes, K]  torch nn.Linear layout, K = C*H*W (c,h,w-major)
    bias   : [num_classes]
    returns: [B, num_classes] float32
    """
    vmem_limit, def_bb, def_bk, b_splits = _hw_config()
    block_b = def_bb if block_b is None else block_b
    block_k = def_bk if block_k is None else block_k

    B, H, W, C = x_nhwc.shape
    N, K = weight.shape
    assert K == C * H * W

    # Flatten the activation WITHOUT transposing it (pure reshape, no copy of
    # the big tensor).  The tiny weight is permuted instead, from torch's
    # (c,h,w)-major flatten order to the activation's (h,w,c)-major order:
    # w_kn[h*W*C + w*C + c, n].
    x_flat = x_nhwc.reshape(B, K)
    w_kn = jnp.transpose(weight.reshape(N, C, H, W), (2, 3, 1, 0)).reshape(K, N)

    # Tile sizes: lane-dense padded N; K tile that divides K whenever possible
    # (no ragged mask); B tile split so multi-TensorCore chips see >= 2 blocks
    # on the "parallel" axis.
    n_pad = _round_up(N, 128)
    tk = _pick_tk(K, block_k)
    tb = min(block_b, max(8, _round_up(pl.cdiv(B, b_splits), 8)))
    num_kb = pl.cdiv(K, tk)
    num_bb = pl.cdiv(B, tb)
    k_pad = num_kb * tk
    k_rem = 0 if K % tk == 0 else K - (num_kb - 1) * tk

    # One-time pads / casts on the small tensors only (hoisted under jit).
    w_kn = jnp.pad(w_kn.astype(compute_dtype), ((0, k_pad - K), (0, n_pad - N)))
    b2d = jnp.pad(bias.astype(jnp.float32), (0, n_pad - N)).reshape(1, n_pad)

    kernel = functools.partial(_train_head_kernel, k_rem=k_rem)

    x_bytes = x_flat.size * x_flat.dtype.itemsize
    w_bytes = w_kn.size * w_kn.dtype.itemsize
    b_bytes = b2d.size * b2d.dtype.itemsize
    o_bytes = B * n_pad * 4

    out = pl.pallas_call(
        kernel,
        out_shape=jax.ShapeDtypeStruct((B, n_pad), jnp.float32),
        grid=(num_bb, num_kb),
        in_specs=[
            pl.BlockSpec((tb, tk), lambda i, k: (i, k)),      # activation tile
            pl.BlockSpec((tk, n_pad), lambda i, k: (k, 0)),   # weight tile
            pl.BlockSpec((1, n_pad), lambda i, k: (0, 0)),    # bias (resident)
        ],
        out_specs=pl.BlockSpec((tb, n_pad), lambda i, k: (i, 0)),
        compiler_params=pltpu.CompilerParams(
            dimension_semantics=("parallel", "arbitrary"),
            vmem_limit_bytes=vmem_limit,
        ),
        cost_estimate=pl.CostEstimate(
            flops=2 * B * k_pad * n_pad,
            transcendentals=0,
            bytes_accessed=x_bytes + w_bytes * num_bb + b_bytes + o_bytes,
        ),
    )(x_flat, w_kn, b2d)

    return out[:, :N]


def init_train_head_params(key, input_channels, bottleneck_size, num_classes):
    """Deterministic xavier_uniform_ weight + zero bias, torch shapes."""
    K = input_channels * bottleneck_size * bottleneck_size
    bound = math.sqrt(6.0 / (K + num_classes))
    weight = jax.random.uniform(
        key, (num_classes, K), dtype=jnp.float32, minval=-bound, maxval=bound
    )
    bias = jnp.zeros((num_classes,), dtype=jnp.float32)
    return weight, bias


if __name__ == "__main__":
    # Small shapes consistent with the module: 7x7 bottleneck, C=32 channels,
    # 10 classes, batch=2 (original defaults use C=1280; shrunk for the test).
    B, H, W, C = 2, 7, 7, 32
    num_classes = 10

    key = jax.random.PRNGKey(0)
    k_x, k_w = jax.random.split(key)

    x_f32 = jax.random.normal(k_x, (B, H, W, C), dtype=jnp.float32)
    weight, bias = init_train_head_params(k_w, C, H, num_classes)

    # Producer contract: hand the activation to the head already in bf16 so
    # the dominant (HBM-bound) activation read is halved.
    x = x_f32.astype(jnp.bfloat16)

    out = jax.block_until_ready(train_head_forward(x, weight, bias))
    assert out.shape == (B, num_classes)

    # Reference: same math as the torch module.  Primary check uses the same
    # bf16 MXU feed (exact up to f32 accumulation order); secondary loose check
    # against full-f32 math.
    x_flat_ref = jnp.transpose(x_f32, (0, 3, 1, 2)).reshape(B, -1)
    x_q = x_flat_ref.astype(jnp.bfloat16).astype(jnp.float32)
    w_q = weight.astype(jnp.bfloat16).astype(jnp.float32)
    ref_q = x_q @ w_q.T + bias
    ref_f32 = x_flat_ref @ weight.T + bias

    assert jnp.allclose(out, ref_q, atol=2e-3, rtol=2e-3)
    assert jnp.allclose(out, ref_f32, atol=1e-1, rtol=1e-1)

    print("KERNEL_OK")
</pallas_src>

<mosaic_0001>
module attributes {stable_mosaic.version = 11 : i64} {
  func.func @_train_head_kernel(%arg0: i32, %arg1: i32, %arg2: memref<8x1568xbf16, #tpu.memory_space<vmem>>, %arg3: memref<1568x128xbf16, #tpu.memory_space<vmem>>, %arg4: memref<1x128xf32, #tpu.memory_space<vmem>>, %arg5: memref<8x128xf32, #tpu.memory_space<vmem>>) attributes {dimension_semantics = [#tpu.dimension_semantics<parallel>, #tpu.dimension_semantics<arbitrary>], iteration_bounds = array<i64: 1, 1>, scalar_prefetch = 0 : i64, scratch_operands = 0 : i64, tpu.core_type = #tpu.core_type<tc>, window_params = [{transform_indices = @transform_0, window_bounds = array<i64: 8, 1568>}, {transform_indices = @transform_1, window_bounds = array<i64: 1568, 128>}, {pipeline_mode = #tpu.pipeline_mode<synchronous>, transform_indices = @transform_2, window_bounds = array<i64: 1, 128>}, {transform_indices = @transform_3, window_bounds = array<i64: 8, 128>}]} {
    %c0_i32 = arith.constant 0 : i32
    %0 = arith.cmpi eq, %arg1, %c0_i32 : i32
    %1 = arith.extui %0 : i1 to i32
    %c0_i32_0 = arith.constant 0 : i32
    %2 = arith.cmpi ne, %1, %c0_i32_0 : i32
    scf.if %2 {
      %cst_10 = arith.constant 0.000000e+00 : f32
      %12 = vector.broadcast %cst_10 : f32 to vector<8x128xf32>
      %c0_11 = arith.constant 0 : index
      %c0_12 = arith.constant 0 : index
      %13 = vector.load %arg5[%c0_11, %c0_12] : memref<8x128xf32, #tpu.memory_space<vmem>>, vector<8x128xf32>
      tpu.vector_store %arg5[%c0_11, %c0_12], %12 {strides = array<i32>} : memref<8x128xf32, #tpu.memory_space<vmem>>, vector<8x128xf32>,
    } else {
    }
    %c0 = arith.constant 0 : index
    %c0_1 = arith.constant 0 : index
    %3 = vector.load %arg2[%c0, %c0_1] : memref<8x1568xbf16, #tpu.memory_space<vmem>>, vector<8x1568xbf16>
    %c0_2 = arith.constant 0 : index
    %c0_3 = arith.constant 0 : index
    %4 = vector.load %arg5[%c0_2, %c0_3] : memref<8x128xf32, #tpu.memory_space<vmem>>, vector<8x128xf32>
    %c0_4 = arith.constant 0 : index
    %c0_5 = arith.constant 0 : index
    %5 = vector.load %arg3[%c0_4, %c0_5] : memref<1568x128xbf16, #tpu.memory_space<vmem>>, vector<1568x128xbf16>
    %cst = arith.constant dense<0.000000e+00> : vector<8x128xf32>
    %6 = tpu.matmul %3, %5, %cst {dimension_numbers = #tpu.dot_dimension_numbers<[1], [0], [0], [1], [0, 0, 1, 1], [], []>} : vector<8x1568xbf16>, vector<1568x128xbf16>, vector<8x128xf32> -> vector<8x128xf32>
    %7 = arith.addf %4, %6 : vector<8x128xf32>
    %c0_6 = arith.constant 0 : index
    %c0_7 = arith.constant 0 : index
    %8 = vector.load %arg5[%c0_6, %c0_7] : memref<8x128xf32, #tpu.memory_space<vmem>>, vector<8x128xf32>
    tpu.vector_store %arg5[%c0_6, %c0_7], %7 {strides = array<i32>} : memref<8x128xf32, #tpu.memory_space<vmem>>, vector<8x128xf32>,
    %c0_i32_8 = arith.constant 0 : i32
    %9 = arith.cmpi eq, %arg1, %c0_i32_8 : i32
    %10 = arith.extui %9 : i1 to i32
    %c0_i32_9 = arith.constant 0 : i32
    %11 = arith.cmpi ne, %10, %c0_i32_9 : i32
    scf.if %11 {
      %c0_10 = arith.constant 0 : index
      %c0_11 = arith.constant 0 : index
      %12 = vector.load %arg5[%c0_10, %c0_11] : memref<8x128xf32, #tpu.memory_space<vmem>>, vector<8x128xf32>
      %c0_12 = arith.constant 0 : index
      %c0_13 = arith.constant 0 : index
      %13 = vector.load %arg4[%c0_12, %c0_13] : memref<1x128xf32, #tpu.memory_space<vmem>>, vector<1x128xf32>
      %14 = vector.broadcast %13 : vector<1x128xf32> to vector<8x128xf32>
      %15 = arith.addf %12, %14 : vector<8x128xf32>
      %c0_14 = arith.constant 0 : index
      %c0_15 = arith.constant 0 : index
      %16 = vector.load %arg5[%c0_14, %c0_15] : memref<8x128xf32, #tpu.memory_space<vmem>>, vector<8x128xf32>
      tpu.vector_store %arg5[%c0_14, %c0_15], %15 {strides = array<i32>} : memref<8x128xf32, #tpu.memory_space<vmem>>, vector<8x128xf32>,
    } else {
    }
    return
  }
  func.func @transform_0(%arg0: i32, %arg1: i32) -> (i32, i32) {
    %c0_i32 = arith.constant 0 : i32
    return %arg0, %arg1 : i32, i32
  }
  func.func @transform_1(%arg0: i32, %arg1: i32) -> (i32, i32) {
    %c0_i32 = arith.constant 0 : i32
    %c0_i32_0 = arith.constant 0 : i32
    return %arg1, %c0_i32 : i32, i32
  }
  func.func @transform_2(%arg0: i32, %arg1: i32) -> (i32, i32) {
    %c0_i32 = arith.constant 0 : i32
    %c0_i32_0 = arith.constant 0 : i32
    %c0_i32_1 = arith.constant 0 : i32
    return %c0_i32, %c0_i32_0 : i32, i32
  }
  func.func @transform_3(%arg0: i32, %arg1: i32) -> (i32, i32) {
    %c0_i32 = arith.constant 0 : i32
    %c0_i32_0 = arith.constant 0 : i32
    return %arg0, %c0_i32 : i32, i32
  }
}

</mosaic_0001>

<llo_original>
// kernel: train_head_forward.1
$region0: #{train_head_forward.1}
  #allocation0 [shape = 'u32[]', space=smem, size = 0x4, offset = 0x4, fixed_abs, tag = 'smem constant byte address 0x4 - core index']
  #allocation1 [shape = 'u32[144,128]{1,0:T(1,128)}', space=vmem, size = 0x12000, scoped, tag = 'internal scratch']
  %s0 = inlined_call_operand.vmem [shape: bf16[2,1568], index: 0, kind: input, shape index: {}]
  %s1 = inlined_call_operand.vmem [shape: bf16[1568,128], index: 1, kind: input, shape index: {}]
  %s2 = inlined_call_operand.vmem [shape: f32[1,128], index: 2, kind: input, shape index: {}]
  %s3 = inlined_call_operand.hbm [shape: f32[2,128], index: 3, kind: output, shape index: {}]
  %s4 = sld [smem:[#allocation0]]
  $region30: #{train_head_forward.1} parent=0
    _
  %s6 = ssub.s32 1, %s4
  %s7 = scalar_select 0, %s6, %s4
  $region1: #{train_head_forward.1} parent=0
    #allocation2 [shape = 'u8[4096]{0}', space=vmem, size = 0x1000, scoped, tag = 'output window, operand 0, single buffered']
    #allocation3 [shape = 's32[1]{0}', space=sflag, size = 0x4, scoped, tag = 'scoped memory for train_head_forward.1']
    %8 = vsyncpa [#allocation3], 0
    // Predicated region
    $region2: #{train_head_forward.1} parent=1 // pred_check
      _
    $region3: #{train_head_forward.1} parent=1 // pred_check_branch
      %10 = sbr.rel (0) target = $region5
    $region4: #{train_head_forward.1} parent=1 // pred_region
      _
    $region5: #{train_head_forward.1} parent=1 // pred_fallthru
      _
    // Predicated region
    $region6: #{train_head_forward.1} parent=1 // pred_check
      _
    $region7: #{train_head_forward.1} parent=1 // pred_check_branch
      %12 = sbr.rel (0) target = $region9
    $region8: #{train_head_forward.1} parent=1 // pred_region
      _
    $region9: #{train_head_forward.1} parent=1 // pred_fallthru
      _
    // Predicated region
    $region10: #{train_head_forward.1} parent=1 // pred_check
      _
    $region11: #{train_head_forward.1} parent=1 // pred_check_branch
      %14 = sbr.rel (0) target = $region13
    $region12: #{train_head_forward.1} parent=1 // pred_region
      _
    $region13: #{train_head_forward.1} parent=1 // pred_fallthru
      _
    %p16 = scmp.eq.s32.totalorder 0, 0
    // Predicated region
    $region14: #{train_head_forward.1} parent=1 // pred_check
      %p17 = pneg %p16
    $region15: #{train_head_forward.1} parent=1 // pred_check_branch
      %19 = sbr.rel (%p17) target = $region17
    $region16: #{train_head_forward.1} parent=1 // pred_region
      %20 = vst [vmem:[#allocation2] sm:$0xff] 0.0
    $region17: #{train_head_forward.1} parent=1 // pred_fallthru
      _
    %v21 = vld [vmem:[%s0] sm:$0xff]
    %v22 = vld [vmem:[%s0 + $0x8] sm:$0x1f]
    %v23 = vld [vmem:[%s0 + $0xd] sm:$0xff]
    %v24 = vld [vmem:[%s0 + $0x15] sm:$0x1f]
    %v25 = vld [vmem:[%s0 + $0x1a] sm:$0xff]
    %v26 = vld [vmem:[%s0 + $0x22] sm:$0x1f]
    %v27 = vld [vmem:[%s0 + $0x27] sm:$0xff]
    %v28 = vld [vmem:[%s0 + $0x2f] sm:$0x1f]
    %v29 = vld [vmem:[#allocation2] sm:$0xff]
    %v30 = vld [vmem:[%s1] sm:$0xf]
    %v31 = vld [vmem:[%s1 + $0x4] sm:$0xf]
    %v32 = vld [vmem:[%s1 + $0x8] sm:$0xf]
    %v33 = vld [vmem:[%s1 + $0xc] sm:$0xf]
    %v34 = vld [vmem:[%s1 + $0x10] sm:$0xf]
    %v35 = vld [vmem:[%s1 + $0x14] sm:$0xf]
    %v36 = vld [vmem:[%s1 + $0x18] sm:$0xf]
    %v37 = vld [vmem:[%s1 + $0x1c] sm:$0xf]
    %v38 = vld [vmem:[%s1 + $0x20] sm:$0xf]
    %v39 = vld [vmem:[%s1 + $0x24] sm:$0xf]
    %v40 = vld [vmem:[%s1 + $0x28] sm:$0xf]
    %v41 = vld [vmem:[%s1 + $0x2c] sm:$0xf]
    %v42 = vld [vmem:[%s1 + $0x30] sm:$0xf]
    %v43 = vld [vmem:[%s1 + $0x34] sm:$0xf]
    %v44 = vld [vmem:[%s1 + $0x38] sm:$0xf]
    %v45 = vld [vmem:[%s1 + $0x3c] sm:$0xf]
    %v46 = vld [vmem:[%s1 + $0x40] sm:$0xf]
    %v47 = vld [vmem:[%s1 + $0x44] sm:$0xf]
    %v48 = vld [vmem:[%s1 + $0x48] sm:$0xf]
    %v49 = vld [vmem:[%s1 + $0x4c] sm:$0xf]
    %v50 = vld [vmem:[%s1 + $0x50] sm:$0xf]
    %v51 = vld [vmem:[%s1 + $0x54] sm:$0xf]
    %v52 = vld [vmem:[%s1 + $0x58] sm:$0xf]
    %v53 = vld [vmem:[%s1 + $0x5c] sm:$0xf]
    %v54 = vld [vmem:[%s1 + $0x60] sm:$0xf]
    %v55 = vld [vmem:[%s1 + $0x64] sm:$0xf]
    %v56 = vld [vmem:[%s1 + $0x68] sm:$0xf]
    %v57 = vld [vmem:[%s1 + $0x6c] sm:$0xf]
    %v58 = vld [vmem:[%s1 + $0x70] sm:$0xf]
    %v59 = vld [vmem:[%s1 + $0x74] sm:$0xf]
    %v60 = vld [vmem:[%s1 + $0x78] sm:$0xf]
    %v61 = vld [vmem:[%s1 + $0x7c] sm:$0xf]
    %v62 = vld [vmem:[%s1 + $0x80] sm:$0xf]
    %v63 = vld [vmem:[%s1 + $0x84] sm:$0xf]
    %v64 = vld [vmem:[%s1 + $0x88] sm:$0xf]
    %v65 = vld [vmem:[%s1 + $0x8c] sm:$0xf]
    %v66 = vld [vmem:[%s1 + $0x90] sm:$0xf]
    %v67 = vld [vmem:[%s1 + $0x94] sm:$0xf]
    %v68 = vld [vmem:[%s1 + $0x98] sm:$0xf]
    %v69 = vld [vmem:[%s1 + $0x9c] sm:$0xf]
    %v70 = vld [vmem:[%s1 + $0xa0] sm:$0xf]
    %v71 = vld [vmem:[%s1 + $0xa4] sm:$0xf]
    %v72 = vld [vmem:[%s1 + $0xa8] sm:$0xf]
    %v73 = vld [vmem:[%s1 + $0xac] sm:$0xf]
    %v74 = vld [vmem:[%s1 + $0xb0] sm:$0xf]
    %v75 = vld [vmem:[%s1 + $0xb4] sm:$0xf]
    %v76 = vld [vmem:[%s1 + $0xb8] sm:$0xf]
    %v77 = vld [vmem:[%s1 + $0xbc] sm:$0xf]
    %v78 = vld [vmem:[%s1 + $0xc0] sm:$0xf]
    %v79 = vld [vmem:[%s1 + $0xc4] sm:$0xf]
    %v80 = vld [vmem:[%s1 + $0xc8] sm:$0xf]
    %v81 = vld [vmem:[%s1 + $0xcc] sm:$0xf]
    %v82 = vld [vmem:[%s1 + $0xd0] sm:$0xf]
    %v83 = vld [vmem:[%s1 + $0xd4] sm:$0xf]
    %v84 = vld [vmem:[%s1 + $0xd8] sm:$0xf]
    %v85 = vld [vmem:[%s1 + $0xdc] sm:$0xf]
    %v86 = vld [vmem:[%s1 + $0xe0] sm:$0xf]
    %v87 = vld [vmem:[%s1 + $0xe4] sm:$0xf]
    %v88 = vld [vmem:[%s1 + $0xe8] sm:$0xf]
    %v89 = vld [vmem:[%s1 + $0xec] sm:$0xf]
    %v90 = vld [vmem:[%s1 + $0xf0] sm:$0xf]
    %v91 = vld [vmem:[%s1 + $0xf4] sm:$0xf]
    %v92 = vld [vmem:[%s1 + $0xf8] sm:$0xf]
    %v93 = vld [vmem:[%s1 + $0xfc] sm:$0xf]
    %v94 = vld [vmem:[%s1 + $0x100] sm:$0xf]
    %v95 = vld [vmem:[%s1 + $0x104] sm:$0xf]
    %v96 = vld [vmem:[%s1 + $0x108] sm:$0xf]
    %v97 = vld [vmem:[%s1 + $0x10c] sm:$0xf]
    %v98 = vld [vmem:[%s1 + $0x110] sm:$0xf]
    %v99 = vld [vmem:[%s1 + $0x114] sm:$0xf]
    %v100 = vld [vmem:[%s1 + $0x118] sm:$0xf]
    %v101 = vld [vmem:[%s1 + $0x11c] sm:$0xf]
    %v102 = vld [vmem:[%s1 + $0x120] sm:$0xf]
    %v103 = vld [vmem:[%s1 + $0x124] sm:$0xf]
    %v104 = vld [vmem:[%s1 + $0x128] sm:$0xf]
    %v105 = vld [vmem:[%s1 + $0x12c] sm:$0xf]
    %v106 = vld [vmem:[%s1 + $0x130] sm:$0xf]
    %v107 = vld [vmem:[%s1 + $0x134] sm:$0xf]
    %v108 = vld [vmem:[%s1 + $0x138] sm:$0xf]
    %v109 = vld [vmem:[%s1 + $0x13c] sm:$0xf]
    %v110 = vld [vmem:[%s1 + $0x140] sm:$0xf]
    %v111 = vld [vmem:[%s1 + $0x144] sm:$0xf]
    %v112 = vld [vmem:[%s1 + $0x148] sm:$0xf]
    %v113 = vld [vmem:[%s1 + $0x14c] sm:$0xf]
    %v114 = vld [vmem:[%s1 + $0x150] sm:$0xf]
    %v115 = vld [vmem:[%s1 + $0x154] sm:$0xf]
    %v116 = vld [vmem:[%s1 + $0x158] sm:$0xf]
    %v117 = vld [vmem:[%s1 + $0x15c] sm:$0xf]
    %v118 = vld [vmem:[%s1 + $0x160] sm:$0xf]
    %v119 = vld [vmem:[%s1 + $0x164] sm:$0xf]
    %v120 = vld [vmem:[%s1 + $0x168] sm:$0xf]
    %v121 = vld [vmem:[%s1 + $0x16c] sm:$0xf]
    %v122 = vld [vmem:[%s1 + $0x170] sm:$0xf]
    %v123 = vld [vmem:[%s1 + $0x174] sm:$0xf]
    %v124 = vld [vmem:[%s1 + $0x178] sm:$0xf]
    %v125 = vld [vmem:[%s1 + $0x17c] sm:$0xf]
    %v126 = vld [vmem:[%s1 + $0x180] sm:$0xf]
    %v127 = vld [vmem:[%s1 + $0x184] sm:$0xf]
    %v128 = vld [vmem:[%s1 + $0x188] sm:$0xf]
    %v129 = vld [vmem:[%s1 + $0x18c] sm:$0xf]
    %v130 = vld [vmem:[%s1 + $0x190] sm:$0xf]
    %v131 = vld [vmem:[%s1 + $0x194] sm:$0xf]
    %v132 = vld [vmem:[%s1 + $0x198] sm:$0xf]
    %v133 = vld [vmem:[%s1 + $0x19c] sm:$0xf]
    %v134 = vld [vmem:[%s1 + $0x1a0] sm:$0xf]
    %v135 = vld [vmem:[%s1 + $0x1a4] sm:$0xf]
    %v136 = vld [vmem:[%s1 + $0x1a8] sm:$0xf]
    %v137 = vld [vmem:[%s1 + $0x1ac] sm:$0xf]
    %v138 = vld [vmem:[%s1 + $0x1b0] sm:$0xf]
    %v139 = vld [vmem:[%s1 + $0x1b4] sm:$0xf]
    %v140 = vld [vmem:[%s1 + $0x1b8] sm:$0xf]
    %v141 = vld [vmem:[%s1 + $0x1bc] sm:$0xf]
    %v142 = vld [vmem:[%s1 + $0x1c0] sm:$0xf]
    %v143 = vld [vmem:[%s1 + $0x1c4] sm:$0xf]
    %v144 = vld [vmem:[%s1 + $0x1c8] sm:$0xf]
    %v145 = vld [vmem:[%s1 + $0x1cc] sm:$0xf]
    %v146 = vld [vmem:[%s1 + $0x1d0] sm:$0xf]
    %v147 = vld [vmem:[%s1 + $0x1d4] sm:$0xf]
    %v148 = vld [vmem:[%s1 + $0x1d8] sm:$0xf]
    %v149 = vld [vmem:[%s1 + $0x1dc] sm:$0xf]
    %v150 = vld [vmem:[%s1 + $0x1e0] sm:$0xf]
    %v151 = vld [vmem:[%s1 + $0x1e4] sm:$0xf]
    %v152 = vld [vmem:[%s1 + $0x1e8] sm:$0xf]
    %v153 = vld [vmem:[%s1 + $0x1ec] sm:$0xf]
    %v154 = vld [vmem:[%s1 + $0x1f0] sm:$0xf]
    %v155 = vld [vmem:[%s1 + $0x1f4] sm:$0xf]
    %v156 = vld [vmem:[%s1 + $0x1f8] sm:$0xf]
    %v157 = vld [vmem:[%s1 + $0x1fc] sm:$0xf]
    %v158 = vld [vmem:[%s1 + $0x200] sm:$0xf]
    %v159 = vld [vmem:[%s1 + $0x204] sm:$0xf]
    %v160 = vld [vmem:[%s1 + $0x208] sm:$0xf]
    %v161 = vld [vmem:[%s1 + $0x20c] sm:$0xf]
    %v162 = vld [vmem:[%s1 + $0x210] sm:$0xf]
    %v163 = vld [vmem:[%s1 + $0x214] sm:$0xf]
    %v164 = vld [vmem:[%s1 + $0x218] sm:$0xf]
    %v165 = vld [vmem:[%s1 + $0x21c] sm:$0xf]
    %v166 = vld [vmem:[%s1 + $0x220] sm:$0xf]
    %v167 = vld [vmem:[%s1 + $0x224] sm:$0xf]
    %v168 = vld [vmem:[%s1 + $0x228] sm:$0xf]
    %v169 = vld [vmem:[%s1 + $0x22c] sm:$0xf]
    %v170 = vld [vmem:[%s1 + $0x230] sm:$0xf]
    %v171 = vld [vmem:[%s1 + $0x234] sm:$0xf]
    %v172 = vld [vmem:[%s1 + $0x238] sm:$0xf]
    %v173 = vld [vmem:[%s1 + $0x23c] sm:$0xf]
    %v174 = vld [vmem:[%s1 + $0x240] sm:$0xf]
    %v175 = vld [vmem:[%s1 + $0x244] sm:$0xf]
    %v176 = vld [vmem:[%s1 + $0x248] sm:$0xf]
    %v177 = vld [vmem:[%s1 + $0x24c] sm:$0xf]
    %v178 = vld [vmem:[%s1 + $0x250] sm:$0xf]
    %v179 = vld [vmem:[%s1 + $0x254] sm:$0xf]
    %v180 = vld [vmem:[%s1 + $0x258] sm:$0xf]
    %v181 = vld [vmem:[%s1 + $0x25c] sm:$0xf]
    %v182 = vld [vmem:[%s1 + $0x260] sm:$0xf]
    %v183 = vld [vmem:[%s1 + $0x264] sm:$0xf]
    %v184 = vld [vmem:[%s1 + $0x268] sm:$0xf]
    %v185 = vld [vmem:[%s1 + $0x26c] sm:$0xf]
    %v186 = vld [vmem:[%s1 + $0x270] sm:$0xf]
    %v187 = vld [vmem:[%s1 + $0x274] sm:$0xf]
    %v188 = vld [vmem:[%s1 + $0x278] sm:$0xf]
    %v189 = vld [vmem:[%s1 + $0x27c] sm:$0xf]
    %v190 = vld [vmem:[%s1 + $0x280] sm:$0xf]
    %v191 = vld [vmem:[%s1 + $0x284] sm:$0xf]
    %v192 = vld [vmem:[%s1 + $0x288] sm:$0xf]
    %v193 = vld [vmem:[%s1 + $0x28c] sm:$0xf]
    %v194 = vld [vmem:[%s1 + $0x290] sm:$0xf]
    %v195 = vld [vmem:[%s1 + $0x294] sm:$0xf]
    %v196 = vld [vmem:[%s1 + $0x298] sm:$0xf]
    %v197 = vld [vmem:[%s1 + $0x29c] sm:$0xf]
    %v198 = vld [vmem:[%s1 + $0x2a0] sm:$0xf]
    %v199 = vld [vmem:[%s1 + $0x2a4] sm:$0xf]
    %v200 = vld [vmem:[%s1 + $0x2a8] sm:$0xf]
    %v201 = vld [vmem:[%s1 + $0x2ac] sm:$0xf]
    %v202 = vld [vmem:[%s1 + $0x2b0] sm:$0xf]
    %v203 = vld [vmem:[%s1 + $0x2b4] sm:$0xf]
    %v204 = vld [vmem:[%s1 + $0x2b8] sm:$0xf]
    %v205 = vld [vmem:[%s1 + $0x2bc] sm:$0xf]
    %v206 = vld [vmem:[%s1 + $0x2c0] sm:$0xf]
    %v207 = vld [vmem:[%s1 + $0x2c4] sm:$0xf]
    %v208 = vld [vmem:[%s1 + $0x2c8] sm:$0xf]
    %v209 = vld [vmem:[%s1 + $0x2cc] sm:$0xf]
    %v210 = vld [vmem:[%s1 + $0x2d0] sm:$0xf]
    %v211 = vld [vmem:[%s1 + $0x2d4] sm:$0xf]
    %v212 = vld [vmem:[%s1 + $0x2d8] sm:$0xf]
    %v213 = vld [vmem:[%s1 + $0x2dc] sm:$0xf]
    %v214 = vld [vmem:[%s1 + $0x2e0] sm:$0xf]
    %v215 = vld [vmem:[%s1 + $0x2e4] sm:$0xf]
    %v216 = vld [vmem:[%s1 + $0x2e8] sm:$0xf]
    %v217 = vld [vmem:[%s1 + $0x2ec] sm:$0xf]
    %v218 = vld [vmem:[%s1 + $0x2f0] sm:$0xf]
    %v219 = vld [vmem:[%s1 + $0x2f4] sm:$0xf]
    %v220 = vld [vmem:[%s1 + $0x2f8] sm:$0xf]
    %v221 = vld [vmem:[%s1 + $0x2fc] sm:$0xf]
    %v222 = vld [vmem:[%s1 + $0x300] sm:$0xf]
    %v223 = vld [vmem:[%s1 + $0x304] sm:$0xf]
    %v224 = vld [vmem:[%s1 + $0x308] sm:$0xf]
    %v225 = vld [vmem:[%s1 + $0x30c] sm:$0xf]
    %v234 = vcombine.low %v21, %v23
    %v235 = vcombine.high %v21, %v23
    %v236 = vcombine.low %v25, %v27
    %v237 = vcombine.high %v25, %v27
    %v239 = vunpack.c.l.s4 1966171168
    %v240 = vunpack.c.0.s8 %v239
    %v241 = vlaneseq
    %v242 = vshrl.u32 %v241, 7
    %v243 = vsub.s32 %v240, %v242
    %v244 = vrot.slane %v234, %v243
    %v246 = vunpack.c.l.s4 1966171168
    %v247 = vunpack.c.0.s8 %v246
    %v248 = vlaneseq
    %v249 = vshrl.u32 %v248, 7
    %v250 = vsub.s32 %v247, %v249
    %v251 = vrot.slane %v235, %v250
    %v253 = vunpack.c.l.s4 1966171168
    %v254 = vunpack.c.0.s8 %v253
    %v255 = vlaneseq
    %v256 = vshrl.u32 %v255, 7
    %v257 = vsub.s32 %v254, %v256
    %v258 = vrot.slane %v236, %v257
    %v260 = vunpack.c.l.s4 1966171168
    %v261 = vunpack.c.0.s8 %v260
    %v262 = vlaneseq
    %v263 = vshrl.u32 %v262, 7
    %v264 = vsub.s32 %v261, %v263
    %v265 = vrot.slane %v237, %v264
    %v266 = vcombine.low %v244, %v258
    %v267 = vcombine.high %v244, %v258
    %v268 = vcombine.low %v251, %v265
    %v269 = vcombine.high %v251, %v265
    %v271 = vunpack.c.l.s4 1966171168
    %v272 = vunpack.c.0.s8 %v271
    %v273 = vlaneseq
    %v274 = vshrl.u32 %v273, 7
    %v275 = vsub.s32 %v272, %v274
    %v276 = vrot.slane %v266, %v275
    %v278 = vunpack.c.l.s4 1966171168
    %v279 = vunpack.c.0.s8 %v278
    %v280 = vlaneseq
    %v281 = vshrl.u32 %v280, 7
    %v282 = vsub.s32 %v279, %v281
    %v283 = vrot.slane %v268, %v282
    %v285 = vunpack.c.l.s4 1966171168
    %v286 = vunpack.c.0.s8 %v285
    %v287 = vlaneseq
    %v288 = vshrl.u32 %v287, 7
    %v289 = vsub.s32 %v286, %v288
    %v290 = vrot.slane %v267, %v289
    %v292 = vunpack.c.l.s4 1966171168
    %v293 = vunpack.c.0.s8 %v292
    %v294 = vlaneseq
    %v295 = vshrl.u32 %v294, 7
    %v296 = vsub.s32 %v293, %v295
    %v297 = vrot.slane %v269, %v296
    %v298 = vcombine.high %v276, %v276
    %v299 = vcombine.high %v283, %v283
    %v300 = vcombine.high %v290, %v290
    %v301 = vcombine.high %v297, %v297
    %v302 = vcombine.low %v22, %v24
    %v303 = vcombine.high %v22, %v24
    %v304 = vcombine.low %v26, %v28
    %v305 = vcombine.high %v26, %v28
    %v307 = vunpack.c.l.s4 1966171168
    %v308 = vunpack.c.0.s8 %v307
    %v309 = vlaneseq
    %v310 = vshrl.u32 %v309, 7
    %v311 = vsub.s32 %v308, %v310
    %v312 = vrot.slane %v302, %v311
    %v314 = vunpack.c.l.s4 1966171168
    %v315 = vunpack.c.0.s8 %v314
    %v316 = vlaneseq
    %v317 = vshrl.u32 %v316, 7
    %v318 = vsub.s32 %v315, %v317
    %v319 = vrot.slane %v303, %v318
    %v321 = vunpack.c.l.s4 1966171168
    %v322 = vunpack.c.0.s8 %v321
    %v323 = vlaneseq
    %v324 = vshrl.u32 %v323, 7
    %v325 = vsub.s32 %v322, %v324
    %v326 = vrot.slane %v304, %v325
    %v328 = vunpack.c.l.s4 1966171168
    %v329 = vunpack.c.0.s8 %v328
    %v330 = vlaneseq
    %v331 = vshrl.u32 %v330, 7
    %v332 = vsub.s32 %v329, %v331
    %v333 = vrot.slane %v305, %v332
    %v334 = vcombine.low %v312, %v326
    %v335 = vcombine.high %v312, %v326
    %v336 = vcombine.low %v319, %v333
    %v338 = vunpack.c.l.s4 1966171168
    %v339 = vunpack.c.0.s8 %v338
    %v340 = vlaneseq
    %v341 = vshrl.u32 %v340, 7
    %v342 = vsub.s32 %v339, %v341
    %v343 = vrot.slane %v334, %v342
    %v345 = vunpack.c.l.s4 1966171168
    %v346 = vunpack.c.0.s8 %v345
    %v347 = vlaneseq
    %v348 = vshrl.u32 %v347, 7
    %v349 = vsub.s32 %v346, %v348
    %v350 = vrot.slane %v336, %v349
    %v352 = vunpack.c.l.s4 1966171168
    %v353 = vunpack.c.0.s8 %v352
    %v354 = vlaneseq
    %v355 = vshrl.u32 %v354, 7
    %v356 = vsub.s32 %v353, %v355
    %v357 = vrot.slane %v335, %v356
    %v358 = vcombine.high %v343, %v343
    %v359 = vcombine.high %v357, %v357
    %v568 = vunpack.c.l.b16 %v30
    %v569 = vunpack.c.l.b16 %v31
    %v570 = vunpack.c.l.b16 %v32
    %v571 = vunpack.c.l.b16 %v33
    %v572 = vunpack.c.l.b16 %v34
    %v573 = vunpack.c.l.b16 %v35
    %v574 = vunpack.c.l.b16 %v36
    %v575 = vunpack.c.l.b16 %v37
    %v576 = vunpack.c.l.b16 %v38
    %v577 = vunpack.c.l.b16 %v39
    %v578 = vunpack.c.l.b16 %v40
    %v579 = vunpack.c.l.b16 %v41
    %v580 = vunpack.c.l.b16 %v42
    %v581 = vunpack.c.l.b16 %v43
    %v582 = vunpack.c.l.b16 %v44
    %v583 = vunpack.c.l.b16 %v45
    %v584 = vunpack.c.l.b16 %v46
    %v585 = vunpack.c.l.b16 %v47
    %v586 = vunpack.c.l.b16 %v48
    %v587 = vunpack.c.l.b16 %v49
    %v588 = vunpack.c.l.b16 %v50
    %v589 = vunpack.c.l.b16 %v51
    %v590 = vunpack.c.l.b16 %v52
    %v591 = vunpack.c.l.b16 %v53
    %v592 = vunpack.c.l.b16 %v54
    %v593 = vunpack.c.l.b16 %v55
    %v594 = vunpack.c.l.b16 %v56
    %v595 = vunpack.c.l.b16 %v57
    %v596 = vunpack.c.l.b16 %v58
    %v597 = vunpack.c.l.b16 %v59
    %v598 = vunpack.c.l.b16 %v60
    %v599 = vunpack.c.l.b16 %v61
    %v600 = vunpack.c.l.b16 %v62
    %v601 = vunpack.c.l.b16 %v63
    %v602 = vunpack.c.l.b16 %v64
    %v603 = vunpack.c.l.b16 %v65
    %v604 = vunpack.c.l.b16 %v66
    %v605 = vunpack.c.l.b16 %v67
    %v606 = vunpack.c.l.b16 %v68
    %v607 = vunpack.c.l.b16 %v69
    %v608 = vunpack.c.l.b16 %v70
    %v609 = vunpack.c.l.b16 %v71
    %v610 = vunpack.c.l.b16 %v72
    %v611 = vunpack.c.l.b16 %v73
    %v612 = vunpack.c.l.b16 %v74
    %v613 = vunpack.c.l.b16 %v75
    %v614 = vunpack.c.l.b16 %v76
    %v615 = vunpack.c.l.b16 %v77
    %v616 = vunpack.c.l.b16 %v78
    %v617 = vunpack.c.l.b16 %v79
    %v618 = vunpack.c.l.b16 %v80
    %v619 = vunpack.c.l.b16 %v81
    %v620 = vunpack.c.l.b16 %v82
    %v621 = vunpack.c.l.b16 %v83
    %v622 = vunpack.c.l.b16 %v84
    %v623 = vunpack.c.l.b16 %v85
    %v624 = vunpack.c.l.b16 %v86
    %v625 = vunpack.c.l.b16 %v87
    %v626 = vunpack.c.l.b16 %v88
    %v627 = vunpack.c.l.b16 %v89
    %v628 = vunpack.c.l.b16 %v90
    %v629 = vunpack.c.l.b16 %v91
    %v630 = vunpack.c.l.b16 %v92
    %v631 = vunpack.c.l.b16 %v93
    %v632 = vunpack.c.l.b16 %v94
    %v633 = vunpack.c.l.b16 %v95
    %v634 = vunpack.c.l.b16 %v96
    %v635 = vunpack.c.l.b16 %v97
    %v636 = vunpack.c.l.b16 %v98
    %v637 = vunpack.c.l.b16 %v99
    %v638 = vunpack.c.l.b16 %v100
    %v639 = vunpack.c.l.b16 %v101
    %v640 = vunpack.c.l.b16 %v102
    %v641 = vunpack.c.l.b16 %v103
    %v642 = vunpack.c.l.b16 %v104
    %v643 = vunpack.c.l.b16 %v105
    %v644 = vunpack.c.l.b16 %v106
    %v645 = vunpack.c.l.b16 %v107
    %v646 = vunpack.c.l.b16 %v108
    %v647 = vunpack.c.l.b16 %v109
    %v648 = vunpack.c.l.b16 %v110
    %v649 = vunpack.c.l.b16 %v111
    %v650 = vunpack.c.l.b16 %v112
    %v651 = vunpack.c.l.b16 %v113
    %v652 = vunpack.c.l.b16 %v114
    %v653 = vunpack.c.l.b16 %v115
    %v654 = vunpack.c.l.b16 %v116
    %v655 = vunpack.c.l.b16 %v117
    %v656 = vunpack.c.l.b16 %v118
    %v657 = vunpack.c.l.b16 %v119
    %v658 = vunpack.c.l.b16 %v120
    %v659 = vunpack.c.l.b16 %v121
    %v660 = vunpack.c.l.b16 %v122
    %v661 = vunpack.c.l.b16 %v123
    %v662 = vunpack.c.l.b16 %v124
    %v663 = vunpack.c.l.b16 %v125
    %v664 = vunpack.c.l.b16 %v126
    %v665 = vunpack.c.l.b16 %v127
    %v666 = vunpack.c.l.b16 %v128
    %v667 = vunpack.c.l.b16 %v129
    %v668 = vunpack.c.l.b16 %v130
    %v669 = vunpack.c.l.b16 %v131
    %v670 = vunpack.c.l.b16 %v132
    %v671 = vunpack.c.l.b16 %v133
    %v672 = vunpack.c.l.b16 %v134
    %v673 = vunpack.c.l.b16 %v135
    %v674 = vunpack.c.l.b16 %v136
    %v675 = vunpack.c.l.b16 %v137
    %v676 = vunpack.c.l.b16 %v138
    %v677 = vunpack.c.l.b16 %v139
    %v678 = vunpack.c.l.b16 %v140
    %v679 = vunpack.c.l.b16 %v141
    %v680 = vunpack.c.l.b16 %v142
    %v681 = vunpack.c.l.b16 %v143
    %v682 = vunpack.c.l.b16 %v144
    %v683 = vunpack.c.l.b16 %v145
    %v684 = vunpack.c.l.b16 %v146
    %v685 = vunpack.c.l.b16 %v147
    %v686 = vunpack.c.l.b16 %v148
    %v687 = vunpack.c.l.b16 %v149
    %v688 = vunpack.c.l.b16 %v150
    %v689 = vunpack.c.l.b16 %v151
    %v690 = vunpack.c.l.b16 %v152
    %v691 = vunpack.c.l.b16 %v153
    %v692 = vunpack.c.l.b16 %v154
    %v693 = vunpack.c.l.b16 %v155
    %v694 = vunpack.c.l.b16 %v156
    %v695 = vunpack.c.l.b16 %v157
    %v696 = vunpack.c.l.b16 %v158
    %v697 = vunpack.c.l.b16 %v159
    %v698 = vunpack.c.l.b16 %v160
    %v699 = vunpack.c.l.b16 %v161
    %v700 = vunpack.c.l.b16 %v162
    %v701 = vunpack.c.l.b16 %v163
    %v702 = vunpack.c.l.b16 %v164
    %v703 = vunpack.c.l.b16 %v165
    %v704 = vunpack.c.l.b16 %v166
    %v705 = vunpack.c.l.b16 %v167
    %v706 = vunpack.c.l.b16 %v168
    %v707 = vunpack.c.l.b16 %v169
    %v708 = vunpack.c.l.b16 %v170
    %v709 = vunpack.c.l.b16 %v171
    %v710 = vunpack.c.l.b16 %v172
    %v711 = vunpack.c.l.b16 %v173
    %v712 = vunpack.c.l.b16 %v174
    %v713 = vunpack.c.l.b16 %v175
    %v714 = vunpack.c.l.b16 %v176
    %v715 = vunpack.c.l.b16 %v177
    %v716 = vunpack.c.l.b16 %v178
    %v717 = vunpack.c.l.b16 %v179
    %v718 = vunpack.c.l.b16 %v180
    %v719 = vunpack.c.l.b16 %v181
    %v720 = vunpack.c.l.b16 %v182
    %v721 = vunpack.c.l.b16 %v183
    %v722 = vunpack.c.l.b16 %v184
    %v723 = vunpack.c.l.b16 %v185
    %v724 = vunpack.c.l.b16 %v186
    %v725 = vunpack.c.l.b16 %v187
    %v726 = vunpack.c.l.b16 %v188
    %v727 = vunpack.c.l.b16 %v189
    %v728 = vunpack.c.l.b16 %v190
    %v729 = vunpack.c.l.b16 %v191
    %v730 = vunpack.c.l.b16 %v192
    %v731 = vunpack.c.l.b16 %v193
    %v732 = vunpack.c.l.b16 %v194
    %v733 = vunpack.c.l.b16 %v195
    %v734 = vunpack.c.l.b16 %v196
    %v735 = vunpack.c.l.b16 %v197
    %v736 = vunpack.c.l.b16 %v198
    %v737 = vunpack.c.l.b16 %v199
    %v738 = vunpack.c.l.b16 %v200
    %v739 = vunpack.c.l.b16 %v201
    %v740 = vunpack.c.l.b16 %v202
    %v741 = vunpack.c.l.b16 %v203
    %v742 = vunpack.c.l.b16 %v204
    %v743 = vunpack.c.l.b16 %v205
    %v744 = vunpack.c.l.b16 %v206
    %v745 = vunpack.c.l.b16 %v207
    %v746 = vunpack.c.l.b16 %v208
    %v747 = vunpack.c.l.b16 %v209
    %v748 = vunpack.c.l.b16 %v210
    %v749 = vunpack.c.l.b16 %v211
    %v750 = vunpack.c.l.b16 %v212
    %v751 = vunpack.c.l.b16 %v213
    %v752 = vunpack.c.l.b16 %v214
    %v753 = vunpack.c.l.b16 %v215
    %v754 = vunpack.c.l.b16 %v216
    %v755 = vunpack.c.l.b16 %v217
    %v756 = vunpack.c.l.b16 %v218
    %v757 = vunpack.c.l.b16 %v219
    %v758 = vunpack.c.l.b16 %v220
    %v759 = vunpack.c.l.b16 %v221
    %v760 = vunpack.c.l.b16 %v222
    %v761 = vunpack.c.l.b16 %v223
    %v762 = vunpack.c.l.b16 %v224
    %v763 = vunpack.c.l.b16 %v225
    %v764 = vpack.c.b16 %v569, %v568
    %v765 = vpack.c.b16 %v571, %v570
    %v766 = vpack.c.b16 %v573, %v572
    %v767 = vpack.c.b16 %v575, %v574
    %v768 = vpack.c.b16 %v577, %v576
    %v769 = vpack.c.b16 %v579, %v578
    %v770 = vpack.c.b16 %v581, %v580
    %v771 = vpack.c.b16 %v583, %v582
    %v772 = vpack.c.b16 %v585, %v584
    %v773 = vpack.c.b16 %v587, %v586
    %v774 = vpack.c.b16 %v589, %v588
    %v775 = vpack.c.b16 %v591, %v590
    %v776 = vpack.c.b16 %v593, %v592
    %v777 = vpack.c.b16 %v595, %v594
    %v778 = vpack.c.b16 %v597, %v596
    %v779 = vpack.c.b16 %v599, %v598
    %v780 = vpack.c.b16 %v601, %v600
    %v781 = vpack.c.b16 %v603, %v602
    %v782 = vpack.c.b16 %v605, %v604
    %v783 = vpack.c.b16 %v607, %v606
    %v784 = vpack.c.b16 %v609, %v608
    %v785 = vpack.c.b16 %v611, %v610
    %v786 = vpack.c.b16 %v613, %v612
    %v787 = vpack.c.b16 %v615, %v614
    %v788 = vpack.c.b16 %v617, %v616
    %v789 = vpack.c.b16 %v619, %v618
    %v790 = vpack.c.b16 %v621, %v620
    %v791 = vpack.c.b16 %v623, %v622
    %v792 = vpack.c.b16 %v625, %v624
    %v793 = vpack.c.b16 %v627, %v626
    %v794 = vpack.c.b16 %v629, %v628
    %v795 = vpack.c.b16 %v631, %v630
    %v796 = vpack.c.b16 %v633, %v632
    %v797 = vpack.c.b16 %v635, %v634
    %v798 = vpack.c.b16 %v637, %v636
    %v799 = vpack.c.b16 %v639, %v638
    %v800 = vpack.c.b16 %v641, %v640
    %v801 = vpack.c.b16 %v643, %v642
    %v802 = vpack.c.b16 %v645, %v644
    %v803 = vpack.c.b16 %v647, %v646
    %v804 = vpack.c.b16 %v649, %v648
    %v805 = vpack.c.b16 %v651, %v650
    %v806 = vpack.c.b16 %v653, %v652
    %v807 = vpack.c.b16 %v655, %v654
    %v808 = vpack.c.b16 %v657, %v656
    %v809 = vpack.c.b16 %v659, %v658
    %v810 = vpack.c.b16 %v661, %v660
    %v811 = vpack.c.b16 %v663, %v662
    %v812 = vpack.c.b16 %v665, %v664
    %v813 = vpack.c.b16 %v667, %v666
    %v814 = vpack.c.b16 %v669, %v668
    %v815 = vpack.c.b16 %v671, %v670
    %v816 = vpack.c.b16 %v673, %v672
    %v817 = vpack.c.b16 %v675, %v674
    %v818 = vpack.c.b16 %v677, %v676
    %v819 = vpack.c.b16 %v679, %v678
    %v820 = vpack.c.b16 %v681, %v680
    %v821 = vpack.c.b16 %v683, %v682
    %v822 = vpack.c.b16 %v685, %v684
    %v823 = vpack.c.b16 %v687, %v686
    %v824 = vpack.c.b16 %v689, %v688
    %v825 = vpack.c.b16 %v691, %v690
    %v826 = vpack.c.b16 %v693, %v692
    %v827 = vpack.c.b16 %v695, %v694
    %v828 = vpack.c.b16 %v697, %v696
    %v829 = vpack.c.b16 %v699, %v698
    %v830 = vpack.c.b16 %v701, %v700
    %v831 = vpack.c.b16 %v703, %v702
    %v832 = vpack.c.b16 %v705, %v704
    %v833 = vpack.c.b16 %v707, %v706
    %v834 = vpack.c.b16 %v709, %v708
    %v835 = vpack.c.b16 %v711, %v710
    %v836 = vpack.c.b16 %v713, %v712
    %v837 = vpack.c.b16 %v715, %v714
    %v838 = vpack.c.b16 %v717, %v716
    %v839 = vpack.c.b16 %v719, %v718
    %v840 = vpack.c.b16 %v721, %v720
    %v841 = vpack.c.b16 %v723, %v722
    %v842 = vpack.c.b16 %v725, %v724
    %v843 = vpack.c.b16 %v727, %v726
    %v844 = vpack.c.b16 %v729, %v728
    %v845 = vpack.c.b16 %v731, %v730
    %v846 = vpack.c.b16 %v733, %v732
    %v847 = vpack.c.b16 %v735, %v734
    %v848 = vpack.c.b16 %v737, %v736
    %v849 = vpack.c.b16 %v739, %v738
    %v850 = vpack.c.b16 %v741, %v740
    %v851 = vpack.c.b16 %v743, %v742
    %v852 = vpack.c.b16 %v745, %v744
    %v853 = vpack.c.b16 %v747, %v746
    %v854 = vpack.c.b16 %v749, %v748
    %v855 = vpack.c.b16 %v751, %v750
    %v856 = vpack.c.b16 %v753, %v752
    %v857 = vpack.c.b16 %v755, %v754
    %v858 = vpack.c.b16 %v757, %v756
    %v859 = vpack.c.b16 %v759, %v758
    %v860 = vpack.c.b16 %v761, %v760
    %v861 = vpack.c.b16 %v763, %v762
    %vm960 = vcmask 261120
    %v962 = vsel %vm960, %v350, 0
    %964 = vmatprep.subr.bf16.mxu0 0
    %965 = vmatpush1.bf16.msra.mxu0 %v764
    %966 = vmatprep.subr.bf16.mxu0 0
    %967 = vmatpush1.bf16.msra.mxu0 %v765
    %968 = vmatprep.subr.bf16.mxu0 0
    %969 = vmatpush1.bf16.msra.mxu0 %v766
    %970 = vmatprep.subr.bf16.mxu0 0
    %971 = vmatpush1.bf16.msra.mxu0 %v767
    %972 = vmatprep.subr.bf16.mxu0 0
    %973 = vmatpush1.bf16.msra.mxu0 %v768
    %974 = vmatprep.subr.bf16.mxu0 0
    %975 = vmatpush1.bf16.msra.mxu0 %v769
    %976 = vmatprep.subr.bf16.mxu0 0
    %977 = vmatpush1.bf16.msra.mxu0 %v770
    %978 = vmatprep.subr.bf16.mxu0 0
    %979 = vmatpush1.bf16.msra.mxu0 %v771
    %980 = vmatprep.subr.bf16.mxu0 0
    %981 = vmatpush1.bf16.msra.mxu0 %v772
    %982 = vmatprep.subr.bf16.mxu0 0
    %983 = vmatpush1.bf16.msra.mxu0 %v773
    %984 = vmatprep.subr.bf16.mxu0 0
    %985 = vmatpush1.bf16.msra.mxu0 %v774
    %986 = vmatprep.subr.bf16.mxu0 0
    %987 = vmatpush1.bf16.msra.mxu0 %v775
    %988 = vmatprep.subr.bf16.mxu0 0
    %989 = vmatpush1.bf16.msra.mxu0 %v776
    %990 = vmatprep.subr.bf16.mxu0 0
    %991 = vmatpush1.bf16.msra.mxu0 %v777
    %992 = vmatprep.subr.bf16.mxu0 0
    %993 = vmatpush1.bf16.msra.mxu0 %v778
    %994 = vmatprep.subr.bf16.mxu0 0
    %995 = vmatpush1.bf16.msra.mxu0 %v779
    %996 = vmatprep.mubr.bf16.mxu0 %v290
    %997 = vmatmul.mubr.bf16.gmra.mrb[0].mxu0 %v276
    %v998 = vpop.f32.mrb[0].mxu0
    %v999 = vadd.f32 0.0, %v998
    %v1000 = vpop.f32.mrb[0].mxu0
    %v1001 = vpop.f32.mrb[0].mxu0
    %v1002 = vpop.f32.mrb[0].mxu0
    %1003 = vdwg.mxu0
    %1004 = vmatprep.subr.bf16.mxu0 0
    %1005 = vmatpush1.bf16.msra.mxu0 %v780
    %1006 = vmatprep.subr.bf16.mxu0 0
    %1007 = vmatpush1.bf16.msra.mxu0 %v781
    %1008 = vmatprep.subr.bf16.mxu0 0
    %1009 = vmatpush1.bf16.msra.mxu0 %v782
    %1010 = vmatprep.subr.bf16.mxu0 0
    %1011 = vmatpush1.bf16.msra.mxu0 %v783
    %1012 = vmatprep.subr.bf16.mxu0 0
    %1013 = vmatpush1.bf16.msra.mxu0 %v784
    %1014 = vmatprep.subr.bf16.mxu0 0
    %1015 = vmatpush1.bf16.msra.mxu0 %v785
    %1016 = vmatprep.subr.bf16.mxu0 0
    %1017 = vmatpush1.bf16.msra.mxu0 %v786
    %1018 = vmatprep.subr.bf16.mxu0 0
    %1019 = vmatpush1.bf16.msra.mxu0 %v787
    %1020 = vmatprep.subr.bf16.mxu0 0
    %1021 = vmatpush1.bf16.msra.mxu0 %v788
    %1022 = vmatprep.subr.bf16.mxu0 0
    %1023 = vmatpush1.bf16.msra.mxu0 %v789
    %1024 = vmatprep.subr.bf16.mxu0 0
    %1025 = vmatpush1.bf16.msra.mxu0 %v790
    %1026 = vmatprep.subr.bf16.mxu0 0
    %1027 = vmatpush1.bf16.msra.mxu0 %v791
    %1028 = vmatprep.subr.bf16.mxu0 0
    %1029 = vmatpush1.bf16.msra.mxu0 %v792
    %1030 = vmatprep.subr.bf16.mxu0 0
    %1031 = vmatpush1.bf16.msra.mxu0 %v793
    %1032 = vmatprep.subr.bf16.mxu0 0
    %1033 = vmatpush1.bf16.msra.mxu0 %v794
    %1034 = vmatprep.subr.bf16.mxu0 0
    %1035 = vmatpush1.bf16.msra.mxu0 %v795
    %1036 = vmatprep.mubr.bf16.mxu0 %v300
    %1037 = vmatmul.mubr.bf16.gmra.mrb[0].mxu0 %v298
    %v1038 = vpop.f32.mrb[0].mxu0
    %v1039 = vadd.f32 %v999, %v1038
    %v1040 = vpop.f32.mrb[0].mxu0
    %v1041 = vpop.f32.mrb[0].mxu0
    %v1042 = vpop.f32.mrb[0].mxu0
    %1043 = vdwg.mxu0
    %1044 = vmatprep.subr.bf16.mxu0 0
    %1045 = vmatpush1.bf16.msra.mxu0 %v796
    %1046 = vmatprep.subr.bf16.mxu0 0
    %1047 = vmatpush1.bf16.msra.mxu0 %v797
    %1048 = vmatprep.subr.bf16.mxu0 0
    %1049 = vmatpush1.bf16.msra.mxu0 %v798
    %1050 = vmatprep.subr.bf16.mxu0 0
    %1051 = vmatpush1.bf16.msra.mxu0 %v799
    %1052 = vmatprep.subr.bf16.mxu0 0
    %1053 = vmatpush1.bf16.msra.mxu0 %v800
    %1054 = vmatprep.subr.bf16.mxu0 0
    %1055 = vmatpush1.bf16.msra.mxu0 %v801
    %1056 = vmatprep.subr.bf16.mxu0 0
    %1057 = vmatpush1.bf16.msra.mxu0 %v802
    %1058 = vmatprep.subr.bf16.mxu0 0
    %1059 = vmatpush1.bf16.msra.mxu0 %v803
    %1060 = vmatprep.subr.bf16.mxu0 0
    %1061 = vmatpush1.bf16.msra.mxu0 %v804
    %1062 = vmatprep.subr.bf16.mxu0 0
    %1063 = vmatpush1.bf16.msra.mxu0 %v805
    %1064 = vmatprep.subr.bf16.mxu0 0
    %1065 = vmatpush1.bf16.msra.mxu0 %v806
    %1066 = vmatprep.subr.bf16.mxu0 0
    %1067 = vmatpush1.bf16.msra.mxu0 %v807
    %1068 = vmatprep.subr.bf16.mxu0 0
    %1069 = vmatpush1.bf16.msra.mxu0 %v808
    %1070 = vmatprep.subr.bf16.mxu0 0
    %1071 = vmatpush1.bf16.msra.mxu0 %v809
    %1072 = vmatprep.subr.bf16.mxu0 0
    %1073 = vmatpush1.bf16.msra.mxu0 %v810
    %1074 = vmatprep.subr.bf16.mxu0 0
    %1075 = vmatpush1.bf16.msra.mxu0 %v811
    %1076 = vmatprep.mubr.bf16.mxu0 %v297
    %1077 = vmatmul.mubr.bf16.gmra.mrb[0].mxu0 %v283
    %v1078 = vpop.f32.mrb[0].mxu0
    %v1079 = vadd.f32 %v1039, %v1078
    %v1080 = vpop.f32.mrb[0].mxu0
    %v1081 = vpop.f32.mrb[0].mxu0
    %v1082 = vpop.f32.mrb[0].mxu0
    %1083 = vdwg.mxu0
    %1084 = vmatprep.subr.bf16.mxu0 0
    %1085 = vmatpush1.bf16.msra.mxu0 %v812
    %1086 = vmatprep.subr.bf16.mxu0 0
    %1087 = vmatpush1.bf16.msra.mxu0 %v813
    %1088 = vmatprep.subr.bf16.mxu0 0
    %1089 = vmatpush1.bf16.msra.mxu0 %v814
    %1090 = vmatprep.subr.bf16.mxu0 0
    %1091 = vmatpush1.bf16.msra.mxu0 %v815
    %1092 = vmatprep.subr.bf16.mxu0 0
    %1093 = vmatpush1.bf16.msra.mxu0 %v816
    %1094 = vmatprep.subr.bf16.mxu0 0
    %1095 = vmatpush1.bf16.msra.mxu0 %v817
    %1096 = vmatprep.subr.bf16.mxu0 0
    %1097 = vmatpush1.bf16.msra.mxu0 %v818
    %1098 = vmatprep.subr.bf16.mxu0 0
    %1099 = vmatpush1.bf16.msra.mxu0 %v819
    %1100 = vmatprep.subr.bf16.mxu0 0
    %1101 = vmatpush1.bf16.msra.mxu0 %v820
    %1102 = vmatprep.subr.bf16.mxu0 0
    %1103 = vmatpush1.bf16.msra.mxu0 %v821
    %1104 = vmatprep.subr.bf16.mxu0 0
    %1105 = vmatpush1.bf16.msra.mxu0 %v822
    %1106 = vmatprep.subr.bf16.mxu0 0
    %1107 = vmatpush1.bf16.msra.mxu0 %v823
    %1108 = vmatprep.subr.bf16.mxu0 0
    %1109 = vmatpush1.bf16.msra.mxu0 %v824
    %1110 = vmatprep.subr.bf16.mxu0 0
    %1111 = vmatpush1.bf16.msra.mxu0 %v825
    %1112 = vmatprep.subr.bf16.mxu0 0
    %1113 = vmatpush1.bf16.msra.mxu0 %v826
    %1114 = vmatprep.subr.bf16.mxu0 0
    %1115 = vmatpush1.bf16.msra.mxu0 %v827
    %1116 = vmatprep.mubr.bf16.mxu0 %v301
    %1117 = vmatmul.mubr.bf16.gmra.mrb[0].mxu0 %v299
    %v1118 = vpop.f32.mrb[0].mxu0
    %v1119 = vadd.f32 %v1079, %v1118
    %v1120 = vpop.f32.mrb[0].mxu0
    %v1121 = vpop.f32.mrb[0].mxu0
    %v1122 = vpop.f32.mrb[0].mxu0
    %1123 = vdwg.mxu0
    %1124 = vmatprep.subr.bf16.mxu0 0
    %1125 = vmatpush1.bf16.msra.mxu0 %v828
    %1126 = vmatprep.subr.bf16.mxu0 0
    %1127 = vmatpush1.bf16.msra.mxu0 %v829
    %1128 = vmatprep.subr.bf16.mxu0 0
    %1129 = vmatpush1.bf16.msra.mxu0 %v830
    %1130 = vmatprep.subr.bf16.mxu0 0
    %1131 = vmatpush1.bf16.msra.mxu0 %v831
    %1132 = vmatprep.subr.bf16.mxu0 0
    %1133 = vmatpush1.bf16.msra.mxu0 %v832
    %1134 = vmatprep.subr.bf16.mxu0 0
    %1135 = vmatpush1.bf16.msra.mxu0 %v833
    %1136 = vmatprep.subr.bf16.mxu0 0
    %1137 = vmatpush1.bf16.msra.mxu0 %v834
    %1138 = vmatprep.subr.bf16.mxu0 0
    %1139 = vmatpush1.bf16.msra.mxu0 %v835
    %1140 = vmatprep.subr.bf16.mxu0 0
    %1141 = vmatpush1.bf16.msra.mxu0 %v836
    %1142 = vmatprep.subr.bf16.mxu0 0
    %1143 = vmatpush1.bf16.msra.mxu0 %v837
    %1144 = vmatprep.subr.bf16.mxu0 0
    %1145 = vmatpush1.bf16.msra.mxu0 %v838
    %1146 = vmatprep.subr.bf16.mxu0 0
    %1147 = vmatpush1.bf16.msra.mxu0 %v839
    %1148 = vmatprep.subr.bf16.mxu0 0
    %1149 = vmatpush1.bf16.msra.mxu0 %v840
    %1150 = vmatprep.subr.bf16.mxu0 0
    %1151 = vmatpush1.bf16.msra.mxu0 %v841
    %1152 = vmatprep.subr.bf16.mxu0 0
    %1153 = vmatpush1.bf16.msra.mxu0 %v842
    %1154 = vmatprep.subr.bf16.mxu0 0
    %1155 = vmatpush1.bf16.msra.mxu0 %v843
    %1156 = vmatprep.mubr.bf16.mxu0 %v357
    %1157 = vmatmul.mubr.bf16.gmra.mrb[0].mxu0 %v343
    %v1158 = vpop.f32.mrb[0].mxu0
    %v1159 = vadd.f32 %v1119, %v1158
    %v1160 = vpop.f32.mrb[0].mxu0
    %v1161 = vpop.f32.mrb[0].mxu0
    %v1162 = vpop.f32.mrb[0].mxu0
    %1163 = vdwg.mxu0
    %1164 = vmatprep.subr.bf16.mxu0 0
    %1165 = vmatpush1.bf16.msra.mxu0 %v844
    %1166 = vmatprep.subr.bf16.mxu0 0
    %1167 = vmatpush1.bf16.msra.mxu0 %v845
    %1168 = vmatprep.subr.bf16.mxu0 0
    %1169 = vmatpush1.bf16.msra.mxu0 %v846
    %1170 = vmatprep.subr.bf16.mxu0 0
    %1171 = vmatpush1.bf16.msra.mxu0 %v847
    %1172 = vmatprep.subr.bf16.mxu0 0
    %1173 = vmatpush1.bf16.msra.mxu0 %v848
    %1174 = vmatprep.subr.bf16.mxu0 0
    %1175 = vmatpush1.bf16.msra.mxu0 %v849
    %1176 = vmatprep.subr.bf16.mxu0 0
    %1177 = vmatpush1.bf16.msra.mxu0 %v850
    %1178 = vmatprep.subr.bf16.mxu0 0
    %1179 = vmatpush1.bf16.msra.mxu0 %v851
    %1180 = vmatprep.subr.bf16.mxu0 0
    %1181 = vmatpush1.bf16.msra.mxu0 %v852
    %1182 = vmatprep.subr.bf16.mxu0 0
    %1183 = vmatpush1.bf16.msra.mxu0 %v853
    %1184 = vmatprep.subr.bf16.mxu0 0
    %1185 = vmatpush1.bf16.msra.mxu0 %v854
    %1186 = vmatprep.subr.bf16.mxu0 0
    %1187 = vmatpush1.bf16.msra.mxu0 %v855
    %1188 = vmatprep.subr.bf16.mxu0 0
    %1189 = vmatpush1.bf16.msra.mxu0 %v856
    %1190 = vmatprep.subr.bf16.mxu0 0
    %1191 = vmatpush1.bf16.msra.mxu0 %v857
    %1192 = vmatprep.subr.bf16.mxu0 0
    %1193 = vmatpush1.bf16.msra.mxu0 %v858
    %1194 = vmatprep.subr.bf16.mxu0 0
    %1195 = vmatpush1.bf16.msra.mxu0 %v859
    %1196 = vmatprep.mubr.bf16.mxu0 %v359
    %1197 = vmatmul.mubr.bf16.gmra.mrb[0].mxu0 %v358
    %v1198 = vpop.f32.mrb[0].mxu0
    %v1199 = vadd.f32 %v1159, %v1198
    %v1200 = vpop.f32.mrb[0].mxu0
    %v1201 = vpop.f32.mrb[0].mxu0
    %v1202 = vpop.f32.mrb[0].mxu0
    %1203 = vdwg.mxu0
    %1204 = vmatprep.subr.bf16.mxu0 0
    %1205 = vmatpush1.bf16.msra.mxu0 %v860
    %1206 = vmatprep.subr.bf16.mxu0 0
    %1207 = vmatpush1.bf16.msra.mxu0 %v861
    %1208 = vmatprep.subr.bf16.mxu0 0
    %1209 = vmatpush1.bf16.msra.mxu0 0
    %1210 = vmatprep.subr.bf16.mxu0 0
    %1211 = vmatpush1.bf16.msra.mxu0 0
    %1212 = vmatprep.subr.bf16.mxu0 0
    %1213 = vmatpush1.bf16.msra.mxu0 0
    %1214 = vmatprep.subr.bf16.mxu0 0
    %1215 = vmatpush1.bf16.msra.mxu0 0
    %1216 = vmatprep.subr.bf16.mxu0 0
    %1217 = vmatpush1.bf16.msra.mxu0 0
    %1218 = vmatprep.subr.bf16.mxu0 0
    %1219 = vmatpush1.bf16.msra.mxu0 0
    %1220 = vmatprep.subr.bf16.mxu0 0
    %1221 = vmatpush1.bf16.msra.mxu0 0
    %1222 = vmatprep.subr.bf16.mxu0 0
    %1223 = vmatpush1.bf16.msra.mxu0 0
    %1224 = vmatprep.subr.bf16.mxu0 0
    %1225 = vmatpush1.bf16.msra.mxu0 0
    %1226 = vmatprep.subr.bf16.mxu0 0
    %1227 = vmatpush1.bf16.msra.mxu0 0
    %1228 = vmatprep.subr.bf16.mxu0 0
    %1229 = vmatpush1.bf16.msra.mxu0 0
    %1230 = vmatprep.subr.bf16.mxu0 0
    %1231 = vmatpush1.bf16.msra.mxu0 0
    %1232 = vmatprep.subr.bf16.mxu0 0
    %1233 = vmatpush1.bf16.msra.mxu0 0
    %1234 = vmatprep.subr.bf16.mxu0 0
    %1235 = vmatpush1.bf16.msra.mxu0 0
    %1236 = vmatprep.mubr.bf16.mxu0 0
    %1237 = vmatmul.mubr.bf16.gmra.mrb[0].mxu0 %v962
    %v1238 = vpop.f32.mrb[0].mxu0
    %v1239 = vadd.f32 %v1199, %v1238
    %v1240 = vpop.f32.mrb[0].mxu0
    %v1241 = vpop.f32.mrb[0].mxu0
    %v1242 = vpop.f32.mrb[0].mxu0
    %1243 = vdwg.mxu0
    %v1244 = vadd.f32 %v29, %v1239
    %1245 = vst [vmem:[#allocation2] sm:$0xff] %v1244
    // Predicated region
    $region18: #{train_head_forward.1} parent=1 // pred_check
      %p1246 = pneg %p16
    $region19: #{train_head_forward.1} parent=1 // pred_check_branch
      %1248 = sbr.rel (%p1246) target = $region21
    $region20: #{train_head_forward.1} parent=1 // pred_region
      %v1249 = vld [vmem:[#allocation2] sm:$0xff]
      %v1250 = vld [vmem:[%s2] sm:$0x1]
      %v1252 = vlaneseq
      %v1253 = vshrl.u32 %v1252, 7
      %v1254 = vsub.s32 0, %v1253
      %v1255 = vrot.slane %v1250, %v1254
      %v1257 = vadd.f32 %v1249, %v1255
      %1258 = vst [vmem:[#allocation2] sm:$0xff] %v1257
    $region21: #{train_head_forward.1} parent=1 // pred_fallthru
      _
    // Predicated region
    $region22: #{train_head_forward.1} parent=1 // pred_check
      _
    $region23: #{train_head_forward.1} parent=1 // pred_check_branch
      %1260 = sbr.rel (0) target = $region25
    $region24: #{train_head_forward.1} parent=1 // pred_region
      %s1262 = ssub.s32 128, 32
      %1263 = vsyncadd [#allocation3], %s1262
      %s1264 = sshll.u32 [#allocation2], 4
      %s1265 = int_to_ptr.vmem [resolvable:$true] %s1264
      %1270 = dma.vmem_to_hbm [thread:$0]  %s1265, 32, %s3, [#allocation3], 32, 32, 2
    $region25: #{train_head_forward.1} parent=1 // pred_fallthru
      _
    // Predicated region
    $region26: #{train_head_forward.1} parent=1 // pred_check
      _
    $region27: #{train_head_forward.1} parent=1 // pred_check_branch
      %1272 = sbr.rel (0) target = $region29
    $region28: #{train_head_forward.1} parent=1 // pred_region
      %1273 = dma.done [#allocation3], 128
    $region29: #{train_head_forward.1} parent=1 // pred_fallthru
      _
    %1274 = vsyncpa [#allocation3], 1

</llo_original>
